<compile_context>
chip_gen: v6e
topology: v6e:2x2x1
jax: 0.10.0
libtpu: 0.0.40
codegen_flags: <defaults>
</compile_context>

<pallas_src>
import functools

import jax
import jax.numpy as jnp
from jax.experimental import pallas as pl
from jax.experimental.pallas import tpu as pltpu

INPUT_SIZE = 2
HIDDEN_SIZE = 5
OUTPUT_SIZE = 1


def mlp2_kernel(w1_ref, w2_ref, x_ref, o_ref):
    # w1_ref: (HIDDEN, IN) scalars in SMEM; w2_ref: (OUT, HIDDEN) scalars in SMEM.
    # x_ref:  (IN, TILE_B) f32 in VMEM (batch on lanes).
    # o_ref:  (1, TILE_B)  f32 in VMEM (lane-dense output).
    #
    #   y[0, :] = sum_j w2[0, j] * relu(sum_k w1[j, k] * x[k, :])
    #
    # Fully unrolled (static 5x2 loops) -> ~15 VPU broadcast-FMAs + 5 max ops
    # per tile; no MXU, no cross-lane/XLU work.
    xs = [x_ref[k:k + 1, :] for k in range(INPUT_SIZE)]   # each (1, TILE_B)
    y = jnp.zeros_like(xs[0])
    for j in range(HIDDEN_SIZE):
        h = w1_ref[j, 0] * xs[0]
        for k in range(1, INPUT_SIZE):
            h = h + w1_ref[j, k] * xs[k]
        h = jnp.maximum(h, 0.0)                            # ReLU, kept in vregs
        y = y + w2_ref[0, j] * h
    o_ref[...] = y


@functools.partial(jax.jit, static_argnames=("tile_b",))
def mlp2_forward(x, w1, w2, *, tile_b=8192):
    """x: (B, IN) f32; w1: (HIDDEN, IN); w2: (OUT, HIDDEN). Returns (B, OUT) f32."""
    batch = x.shape[0]

    # Lane-dense layout: batch on the last axis, padded to a multiple of tile_b.
    # (Zero padding is harmless: relu(W1 @ 0) = 0 and W2 @ 0 = 0; padded columns
    # are sliced off below.)
    padded_b = tile_b * pl.cdiv(batch, tile_b)
    x_t = jnp.pad(x.astype(jnp.float32).T, ((0, 0), (0, padded_b - batch)))

    y_t = pl.pallas_call(
        mlp2_kernel,
        out_shape=jax.ShapeDtypeStruct((OUTPUT_SIZE, padded_b), jnp.float32),
        grid=(padded_b // tile_b,),
        in_specs=[
            # Weights: 15 scalars total, kept resident in SMEM for all grid steps.
            pl.BlockSpec(memory_space=pltpu.SMEM),
            pl.BlockSpec(memory_space=pltpu.SMEM),
            # Activations: lane-dense batch tiles, auto double-buffered.
            pl.BlockSpec((INPUT_SIZE, tile_b), lambda i: (0, i)),
        ],
        out_specs=pl.BlockSpec((OUTPUT_SIZE, tile_b), lambda i: (0, i)),
        compiler_params=pltpu.CompilerParams(
            dimension_semantics=("parallel",),  # batch tiles are independent
        ),
    )(w1.astype(jnp.float32), w2.astype(jnp.float32), x_t)

    # Back to PyTorch layout (B, OUT).
    return y_t[:, :batch].T


def init_params(key):
    # Deterministic synthetic init (uniform, bound 1/sqrt(fan_in), like PyTorch
    # default); weight shapes match nn.Linear: (out_features, in_features).
    k1, k2 = jax.random.split(key)
    b1 = 1.0 / jnp.sqrt(INPUT_SIZE)
    b2 = 1.0 / jnp.sqrt(HIDDEN_SIZE)
    w1 = jax.random.uniform(k1, (HIDDEN_SIZE, INPUT_SIZE), jnp.float32, -b1, b1)
    w2 = jax.random.uniform(k2, (OUTPUT_SIZE, HIDDEN_SIZE), jnp.float32, -b2, b2)
    return w1, w2


def _ref(x, w1, w2):
    return jnp.maximum(x @ w1.T, 0.0) @ w2.T


if __name__ == "__main__":
    key = jax.random.PRNGKey(0)
    kx, kx2, kp = jax.random.split(key, 3)
    w1, w2 = init_params(kp)

    # Small batch (single grid step after padding to one 256-wide tile).
    batch = 8
    x = jax.random.normal(kx, (batch, INPUT_SIZE), jnp.float32)
    out = jax.block_until_ready(mlp2_forward(x, w1, w2, tile_b=256))
    assert out.shape == (batch, OUTPUT_SIZE)
    assert jnp.allclose(out, _ref(x, w1, w2), atol=1e-5, rtol=1e-5)

    # Larger, non-multiple-of-tile batch: exercises padding + multi-step grid.
    batch2 = 1000
    x2 = jax.random.normal(kx2, (batch2, INPUT_SIZE), jnp.float32)
    out2 = jax.block_until_ready(mlp2_forward(x2, w1, w2, tile_b=256))
    assert out2.shape == (batch2, OUTPUT_SIZE)
    assert jnp.allclose(out2, _ref(x2, w1, w2), atol=1e-5, rtol=1e-5)

    print("KERNEL_OK")
</pallas_src>

<mosaic_0001>
module attributes {stable_mosaic.version = 11 : i64} {
  func.func @mlp2_kernel(%arg0: i32, %arg1: memref<5x2xf32, #tpu.memory_space<smem>>, %arg2: memref<1x5xf32, #tpu.memory_space<smem>>, %arg3: memref<2x256xf32, #tpu.memory_space<vmem>>, %arg4: memref<1x256xf32, #tpu.memory_space<vmem>>) attributes {dimension_semantics = [#tpu.dimension_semantics<parallel>], iteration_bounds = array<i64: 1>, scalar_prefetch = 0 : i64, scratch_operands = 0 : i64, tpu.core_type = #tpu.core_type<tc>, window_params = [{transform_indices = @transform_0, window_bounds = array<i64: 5, 2>}, {transform_indices = @transform_1, window_bounds = array<i64: 1, 5>}, {transform_indices = @transform_2, window_bounds = array<i64: 2, 256>}, {transform_indices = @transform_3, window_bounds = array<i64: 1, 256>}]} {
    %c0 = arith.constant 0 : index
    %c0_0 = arith.constant 0 : index
    %0 = vector.load %arg3[%c0, %c0_0] : memref<2x256xf32, #tpu.memory_space<vmem>>, vector<1x256xf32>
    %c1 = arith.constant 1 : index
    %c0_1 = arith.constant 0 : index
    %1 = vector.load %arg3[%c1, %c0_1] : memref<2x256xf32, #tpu.memory_space<vmem>>, vector<1x256xf32>
    %cst = arith.constant 0.000000e+00 : f32
    %2 = vector.broadcast %cst : f32 to vector<1x256xf32>
    %c0_2 = arith.constant 0 : index
    %c0_3 = arith.constant 0 : index
    %3 = memref.load %arg1[%c0_2, %c0_3] : memref<5x2xf32, #tpu.memory_space<smem>>
    %4 = vector.broadcast %3 : f32 to vector<1x256xf32>
    %5 = arith.mulf %4, %0 : vector<1x256xf32>
    %c0_4 = arith.constant 0 : index
    %c1_5 = arith.constant 1 : index
    %6 = memref.load %arg1[%c0_4, %c1_5] : memref<5x2xf32, #tpu.memory_space<smem>>
    %7 = vector.broadcast %6 : f32 to vector<1x256xf32>
    %8 = arith.mulf %7, %1 : vector<1x256xf32>
    %9 = arith.addf %5, %8 : vector<1x256xf32>
    %cst_6 = arith.constant 0.000000e+00 : f32
    %10 = vector.broadcast %cst_6 : f32 to vector<1x256xf32>
    %11 = arith.maximumf %9, %10 : vector<1x256xf32>
    %c0_7 = arith.constant 0 : index
    %c0_8 = arith.constant 0 : index
    %12 = memref.load %arg2[%c0_7, %c0_8] : memref<1x5xf32, #tpu.memory_space<smem>>
    %13 = vector.broadcast %12 : f32 to vector<1x256xf32>
    %14 = arith.mulf %13, %11 : vector<1x256xf32>
    %15 = arith.addf %2, %14 : vector<1x256xf32>
    %c1_9 = arith.constant 1 : index
    %c0_10 = arith.constant 0 : index
    %16 = memref.load %arg1[%c1_9, %c0_10] : memref<5x2xf32, #tpu.memory_space<smem>>
    %17 = vector.broadcast %16 : f32 to vector<1x256xf32>
    %18 = arith.mulf %17, %0 : vector<1x256xf32>
    %c1_11 = arith.constant 1 : index
    %c1_12 = arith.constant 1 : index
    %19 = memref.load %arg1[%c1_11, %c1_12] : memref<5x2xf32, #tpu.memory_space<smem>>
    %20 = vector.broadcast %19 : f32 to vector<1x256xf32>
    %21 = arith.mulf %20, %1 : vector<1x256xf32>
    %22 = arith.addf %18, %21 : vector<1x256xf32>
    %cst_13 = arith.constant 0.000000e+00 : f32
    %23 = vector.broadcast %cst_13 : f32 to vector<1x256xf32>
    %24 = arith.maximumf %22, %23 : vector<1x256xf32>
    %c0_14 = arith.constant 0 : index
    %c1_15 = arith.constant 1 : index
    %25 = memref.load %arg2[%c0_14, %c1_15] : memref<1x5xf32, #tpu.memory_space<smem>>
    %26 = vector.broadcast %25 : f32 to vector<1x256xf32>
    %27 = arith.mulf %26, %24 : vector<1x256xf32>
    %28 = arith.addf %15, %27 : vector<1x256xf32>
    %c2 = arith.constant 2 : index
    %c0_16 = arith.constant 0 : index
    %29 = memref.load %arg1[%c2, %c0_16] : memref<5x2xf32, #tpu.memory_space<smem>>
    %30 = vector.broadcast %29 : f32 to vector<1x256xf32>
    %31 = arith.mulf %30, %0 : vector<1x256xf32>
    %c2_17 = arith.constant 2 : index
    %c1_18 = arith.constant 1 : index
    %32 = memref.load %arg1[%c2_17, %c1_18] : memref<5x2xf32, #tpu.memory_space<smem>>
    %33 = vector.broadcast %32 : f32 to vector<1x256xf32>
    %34 = arith.mulf %33, %1 : vector<1x256xf32>
    %35 = arith.addf %31, %34 : vector<1x256xf32>
    %cst_19 = arith.constant 0.000000e+00 : f32
    %36 = vector.broadcast %cst_19 : f32 to vector<1x256xf32>
    %37 = arith.maximumf %35, %36 : vector<1x256xf32>
    %c0_20 = arith.constant 0 : index
    %c2_21 = arith.constant 2 : index
    %38 = memref.load %arg2[%c0_20, %c2_21] : memref<1x5xf32, #tpu.memory_space<smem>>
    %39 = vector.broadcast %38 : f32 to vector<1x256xf32>
    %40 = arith.mulf %39, %37 : vector<1x256xf32>
    %41 = arith.addf %28, %40 : vector<1x256xf32>
    %c3 = arith.constant 3 : index
    %c0_22 = arith.constant 0 : index
    %42 = memref.load %arg1[%c3, %c0_22] : memref<5x2xf32, #tpu.memory_space<smem>>
    %43 = vector.broadcast %42 : f32 to vector<1x256xf32>
    %44 = arith.mulf %43, %0 : vector<1x256xf32>
    %c3_23 = arith.constant 3 : index
    %c1_24 = arith.constant 1 : index
    %45 = memref.load %arg1[%c3_23, %c1_24] : memref<5x2xf32, #tpu.memory_space<smem>>
    %46 = vector.broadcast %45 : f32 to vector<1x256xf32>
    %47 = arith.mulf %46, %1 : vector<1x256xf32>
    %48 = arith.addf %44, %47 : vector<1x256xf32>
    %cst_25 = arith.constant 0.000000e+00 : f32
    %49 = vector.broadcast %cst_25 : f32 to vector<1x256xf32>
    %50 = arith.maximumf %48, %49 : vector<1x256xf32>
    %c0_26 = arith.constant 0 : index
    %c3_27 = arith.constant 3 : index
    %51 = memref.load %arg2[%c0_26, %c3_27] : memref<1x5xf32, #tpu.memory_space<smem>>
    %52 = vector.broadcast %51 : f32 to vector<1x256xf32>
    %53 = arith.mulf %52, %50 : vector<1x256xf32>
    %54 = arith.addf %41, %53 : vector<1x256xf32>
    %c4 = arith.constant 4 : index
    %c0_28 = arith.constant 0 : index
    %55 = memref.load %arg1[%c4, %c0_28] : memref<5x2xf32, #tpu.memory_space<smem>>
    %56 = vector.broadcast %55 : f32 to vector<1x256xf32>
    %57 = arith.mulf %56, %0 : vector<1x256xf32>
    %c4_29 = arith.constant 4 : index
    %c1_30 = arith.constant 1 : index
    %58 = memref.load %arg1[%c4_29, %c1_30] : memref<5x2xf32, #tpu.memory_space<smem>>
    %59 = vector.broadcast %58 : f32 to vector<1x256xf32>
    %60 = arith.mulf %59, %1 : vector<1x256xf32>
    %61 = arith.addf %57, %60 : vector<1x256xf32>
    %cst_31 = arith.constant 0.000000e+00 : f32
    %62 = vector.broadcast %cst_31 : f32 to vector<1x256xf32>
    %63 = arith.maximumf %61, %62 : vector<1x256xf32>
    %c0_32 = arith.constant 0 : index
    %c4_33 = arith.constant 4 : index
    %64 = memref.load %arg2[%c0_32, %c4_33] : memref<1x5xf32, #tpu.memory_space<smem>>
    %65 = vector.broadcast %64 : f32 to vector<1x256xf32>
    %66 = arith.mulf %65, %63 : vector<1x256xf32>
    %67 = arith.addf %54, %66 : vector<1x256xf32>
    %c0_34 = arith.constant 0 : index
    %c0_35 = arith.constant 0 : index
    %68 = vector.load %arg4[%c0_34, %c0_35] : memref<1x256xf32, #tpu.memory_space<vmem>>, vector<1x256xf32>
    tpu.vector_store %arg4[%c0_34, %c0_35], %67 {strides = array<i32>} : memref<1x256xf32, #tpu.memory_space<vmem>>, vector<1x256xf32>,
    return
  }
  func.func @transform_0(%arg0: i32) -> (i32, i32) {
    %c0_i32 = arith.constant 0 : i32
    %c0_i32_0 = arith.constant 0 : i32
    %c0_i32_1 = arith.constant 0 : i32
    return %c0_i32, %c0_i32_0 : i32, i32
  }
  func.func @transform_1(%arg0: i32) -> (i32, i32) {
    %c0_i32 = arith.constant 0 : i32
    %c0_i32_0 = arith.constant 0 : i32
    %c0_i32_1 = arith.constant 0 : i32
    return %c0_i32, %c0_i32_0 : i32, i32
  }
  func.func @transform_2(%arg0: i32) -> (i32, i32) {
    %c0_i32 = arith.constant 0 : i32
    %c0_i32_0 = arith.constant 0 : i32
    return %c0_i32, %arg0 : i32, i32
  }
  func.func @transform_3(%arg0: i32) -> (i32, i32) {
    %c0_i32 = arith.constant 0 : i32
    %c0_i32_0 = arith.constant 0 : i32
    return %c0_i32, %arg0 : i32, i32
  }
}

</mosaic_0001>

<llo_original>
// kernel: mlp2_forward.1
$region0: #{mlp2_forward.1}
  #allocation0 [shape = 'u32[]', space=smem, size = 0x4, offset = 0x4, fixed_abs, tag = 'smem constant byte address 0x4 - core index']
  #allocation1 [shape = 'u32[144,128]{1,0:T(1,128)}', space=vmem, size = 0x12000, scoped, tag = 'internal scratch']
  %s0 = inlined_call_operand.vmem [shape: f32[5,2], index: 0, kind: input, shape index: {}]
  %s1 = inlined_call_operand.vmem [shape: f32[1,5], index: 1, kind: input, shape index: {}]
  %s2 = inlined_call_operand.vmem [shape: f32[2,256], index: 2, kind: input, shape index: {}]
  %s3 = inlined_call_operand.vmem [shape: f32[1,256], index: 3, kind: output, shape index: {}]
  %s4 = sld [smem:[#allocation0]]
  $region30: #{mlp2_forward.1} parent=0
    _
  %s6 = ssub.s32 1, %s4
  %s7 = scalar_select 0, %s6, %s4
  $region1: #{mlp2_forward.1} parent=0
    #allocation2 [shape = 'u8[4096]{0}', space=smem, size = 0x1000, scoped, tag = 'input window, operand 0, single buffered']
    #allocation3 [shape = 's32[1]{0}', space=sflag, size = 0x4, scoped, tag = 'scoped memory for mlp2_forward.1']
    #allocation4 [shape = 'u8[512]{0}', space=smem, size = 0x200, scoped, tag = 'input window, operand 1, single buffered']
    #allocation5 [shape = 's32[1]{0}', space=sflag, size = 0x4, scoped, tag = 'scoped memory for mlp2_forward.1']
    %8 = vsyncpa [#allocation3], 0
    %9 = vsyncpa [#allocation5], 0
    // Predicated region
    $region2: #{mlp2_forward.1} parent=1 // pred_check
      _
    $region3: #{mlp2_forward.1} parent=1 // pred_check_branch
      %11 = sbr.rel (0) target = $region5
    $region4: #{mlp2_forward.1} parent=1 // pred_region
      %s13 = ssub.s32 128, 128
      %14 = vsyncadd [#allocation3], %s13
      %s16 = sshll.u32 %s0, 4
      %s17 = int_to_ptr.vmem [resolvable:$true] %s16
      %19 = dma.vmem_to_smem %s17, 128, [#allocation2], [#allocation3]
    $region5: #{mlp2_forward.1} parent=1 // pred_fallthru
      _
    // Predicated region
    $region6: #{mlp2_forward.1} parent=1 // pred_check
      _
    $region7: #{mlp2_forward.1} parent=1 // pred_check_branch
      %21 = sbr.rel (0) target = $region9
    $region8: #{mlp2_forward.1} parent=1 // pred_region
      %s23 = ssub.s32 16, 16
      %24 = vsyncadd [#allocation5], %s23
      %s26 = sshll.u32 %s1, 4
      %s27 = int_to_ptr.vmem [resolvable:$true] %s26
      %29 = dma.vmem_to_smem %s27, 16, [#allocation4], [#allocation5]
    $region9: #{mlp2_forward.1} parent=1 // pred_fallthru
      _
    // Predicated region
    $region10: #{mlp2_forward.1} parent=1 // pred_check
      _
    $region11: #{mlp2_forward.1} parent=1 // pred_check_branch
      %31 = sbr.rel (0) target = $region13
    $region12: #{mlp2_forward.1} parent=1 // pred_region
      _
    $region13: #{mlp2_forward.1} parent=1 // pred_fallthru
      _
    // Predicated region
    $region14: #{mlp2_forward.1} parent=1 // pred_check
      _
    $region15: #{mlp2_forward.1} parent=1 // pred_check_branch
      %33 = sbr.rel (0) target = $region17
    $region16: #{mlp2_forward.1} parent=1 // pred_region
      %34 = dma.done [#allocation3], 128
    $region17: #{mlp2_forward.1} parent=1 // pred_fallthru
      _
    // Predicated region
    $region18: #{mlp2_forward.1} parent=1 // pred_check
      _
    $region19: #{mlp2_forward.1} parent=1 // pred_check_branch
      %36 = sbr.rel (0) target = $region21
    $region20: #{mlp2_forward.1} parent=1 // pred_region
      %37 = dma.done [#allocation5], 16
    $region21: #{mlp2_forward.1} parent=1 // pred_fallthru
      _
    %38 = sfence
    %v39 = vld [vmem:[%s2] ss:$2 sm:$0x3]
    %s40 = scalar_lea.vmem %s2, 1
    %v41 = vld [vmem:[%s40] ss:$2 sm:$0x3]
    %s42 = sld [smem:[#allocation2]]
    %v43 = vstv %s42
    %v44 = vmul.f32 %v43, %v39
    %s45 = sld [smem:[#allocation2 + $0x1]]
    %v46 = vstv %s45
    %v47 = vmul.f32 %v46, %v41
    %v48 = vadd.f32 %v44, %v47
    %v49 = vmax.f32 %v48, 0.0
    %s50 = sld [smem:[#allocation4]]
    %v51 = vstv %s50
    %v52 = vmul.f32 %v51, %v49
    %v53 = vadd.f32 %v52, 0.0
    %s54 = sld [smem:[#allocation2 + $0x80]]
    %v55 = vstv %s54
    %v56 = vmul.f32 %v55, %v39
    %s57 = sld [smem:[#allocation2 + $0x81]]
    %v58 = vstv %s57
    %v59 = vmul.f32 %v58, %v41
    %v60 = vadd.f32 %v56, %v59
    %v61 = vmax.f32 %v60, 0.0
    %s62 = sld [smem:[#allocation4 + $0x1]]
    %v63 = vstv %s62
    %v64 = vmul.f32 %v63, %v61
    %v65 = vadd.f32 %v53, %v64
    %s66 = sld [smem:[#allocation2 + $0x100]]
    %v67 = vstv %s66
    %v68 = vmul.f32 %v67, %v39
    %s69 = sld [smem:[#allocation2 + $0x101]]
    %v70 = vstv %s69
    %v71 = vmul.f32 %v70, %v41
    %v72 = vadd.f32 %v68, %v71
    %v73 = vmax.f32 %v72, 0.0
    %s74 = sld [smem:[#allocation4 + $0x2]]
    %v75 = vstv %s74
    %v76 = vmul.f32 %v75, %v73
    %v77 = vadd.f32 %v65, %v76
    %s78 = sld [smem:[#allocation2 + $0x180]]
    %v79 = vstv %s78
    %v80 = vmul.f32 %v79, %v39
    %s81 = sld [smem:[#allocation2 + $0x181]]
    %v82 = vstv %s81
    %v83 = vmul.f32 %v82, %v41
    %v84 = vadd.f32 %v80, %v83
    %v85 = vmax.f32 %v84, 0.0
    %s86 = sld [smem:[#allocation4 + $0x3]]
    %v87 = vstv %s86
    %v88 = vmul.f32 %v87, %v85
    %v89 = vadd.f32 %v77, %v88
    %s90 = sld [smem:[#allocation2 + $0x200]]
    %v91 = vstv %s90
    %v92 = vmul.f32 %v91, %v39
    %s93 = sld [smem:[#allocation2 + $0x201]]
    %v94 = vstv %s93
    %v95 = vmul.f32 %v94, %v41
    %v96 = vadd.f32 %v92, %v95
    %v97 = vmax.f32 %v96, 0.0
    %s98 = sld [smem:[#allocation4 + $0x4]]
    %v99 = vstv %s98
    %v100 = vmul.f32 %v99, %v97
    %v101 = vadd.f32 %v89, %v100
    %v102 = vlaneseq
    %vm103 = vcmp.ge.s32.totalorder %v102, 0
    %vm104 = vcmp.lt.s32.totalorder %v102, 256
    %vm105 = vmand %vm103, %vm104
    %106 = vst.msk [vmem:[%s3] sm:$0x3] %vm105, %v101
    // Predicated region
    $region22: #{mlp2_forward.1} parent=1 // pred_check
      _
    $region23: #{mlp2_forward.1} parent=1 // pred_check_branch
      %108 = sbr.rel (0) target = $region25
    $region24: #{mlp2_forward.1} parent=1 // pred_region
      _
    $region25: #{mlp2_forward.1} parent=1 // pred_fallthru
      _
    // Predicated region
    $region26: #{mlp2_forward.1} parent=1 // pred_check
      _
    $region27: #{mlp2_forward.1} parent=1 // pred_check_branch
      %110 = sbr.rel (0) target = $region29
    $region28: #{mlp2_forward.1} parent=1 // pred_region
      _
    $region29: #{mlp2_forward.1} parent=1 // pred_fallthru
      _
    %111 = vsyncpa [#allocation3], 1
    %112 = vsyncpa [#allocation5], 1

</llo_original>
